<compile_context>
chip_gen: v7x
topology: tpu7x:2x2x1
jax: 0.10.0
libtpu: 0.0.40
codegen_flags: <defaults>
</compile_context>

<pallas_src>
import jax
import jax.numpy as jnp
from jax.experimental import pallas as pl
from jax.experimental.pallas import tpu as pltpu


LANE = 128          # TPU lane width
SUBLANE_BF16 = 16   # bf16 sublane packing granularity (batch-tile alignment)


def _round_up(x, m):
    return ((x + m - 1) // m) * m


def _cdiv(a, b):
    return (a + b - 1) // b


# ----------------------------- Pallas kernel ------------------------------ #
def actor_kernel(x_ref, w1_ref, b1_ref, w2_ref, b2_ref, w3_ref, b3_ref, mu_ref):
    """Fused 3-layer MLP head: two tanh hidden layers + linear mu.

    bf16 operands on the MXU, f32 accumulation; bias add + tanh in f32, with
    the bf16 downcast fused into the activation so only bf16 slabs stay live.
    """
    x = x_ref[...].astype(w1_ref.dtype)                        # f32 -> bf16 in VMEM

    # fc1 -> tanh, fused downcast to bf16
    h1 = jnp.tanh(
        jnp.dot(x, w1_ref[...], preferred_element_type=jnp.float32)
        + b1_ref[...]
    ).astype(w2_ref.dtype)

    # fc2 -> tanh, fused downcast to bf16
    h2 = jnp.tanh(
        jnp.dot(h1, w2_ref[...], preferred_element_type=jnp.float32)
        + b2_ref[...]
    ).astype(w3_ref.dtype)

    # pi (no activation)
    mu = (
        jnp.dot(h2, w3_ref[...], preferred_element_type=jnp.float32)
        + b3_ref[...]
    )
    mu_ref[...] = mu.astype(mu_ref.dtype)


# ------------------------------- wrapper ----------------------------------- #
def actor_forward(x, params, *, max_batch_tile=1024):
    """Fused Actor forward.

    x: (B, state_dim) float32
    params: dict with w1 (S,H), b1 (1,H), w2 (H,H), b2 (1,H),
            w3 (H,A), b3 (1,A), logstd (1,A)   -- all float32, unpadded
    returns: (mu (B, A) float32, std (1, A) float32)
    """
    B, S = x.shape
    H = params["w1"].shape[1]
    A = params["w3"].shape[1]

    # Hidden dim padded to 128 lanes (weights are tiny + resident); state and
    # action dims are left unpadded (full-dim blocks satisfy the (8,128) rule).
    H_pad = _round_up(H, LANE)

    # Batch tile: split B as evenly as possible (avoids pathological padding),
    # keep >= 2 grid steps when B allows so v7x's second TC gets work.
    n_tiles = _cdiv(B, max_batch_tile)
    if B >= 2 * SUBLANE_BF16:
        n_tiles = max(n_tiles, 2)
    TB = _round_up(_cdiv(B, n_tiles), SUBLANE_BF16)
    B_pad = _round_up(B, TB)
    grid = (B_pad // TB,)

    def pad2(a, rows, cols, dtype):
        pr, pc = rows - a.shape[0], cols - a.shape[1]
        out = a if (pr == 0 and pc == 0) else jnp.pad(a, ((0, pr), (0, pc)))
        return out.astype(dtype)

    # Zero padding keeps the math exact for the real rows/cols
    # (padded weight rows/cols and biases are zero -> contribute nothing).
    x_p = x if B_pad == B else jnp.pad(x, ((0, B_pad - B), (0, 0)))  # f32, row-pad only
    w1_p = pad2(params["w1"], S, H_pad, jnp.bfloat16)
    w2_p = pad2(params["w2"], H_pad, H_pad, jnp.bfloat16)
    w3_p = pad2(params["w3"], H_pad, A, jnp.bfloat16)
    b1_p = pad2(params["b1"], 1, H_pad, jnp.float32)
    b2_p = pad2(params["b2"], 1, H_pad, jnp.float32)
    b3_p = params["b3"].astype(jnp.float32)                    # (1, A), no pad

    const = lambda i: (0, 0)   # weights/biases: resident, same block every step

    mu_p = pl.pallas_call(
        actor_kernel,
        out_shape=jax.ShapeDtypeStruct((B_pad, A), jnp.float32),
        grid=grid,
        in_specs=[
            pl.BlockSpec((TB, S), lambda i: (i, 0)),     # x: f32, tiled over batch
            pl.BlockSpec((S, H_pad), const),             # w1
            pl.BlockSpec((1, H_pad), const),             # b1
            pl.BlockSpec((H_pad, H_pad), const),         # w2
            pl.BlockSpec((1, H_pad), const),             # b2
            pl.BlockSpec((H_pad, A), const),             # w3
            pl.BlockSpec((1, A), const),                 # b3
        ],
        out_specs=pl.BlockSpec((TB, A), lambda i: (i, 0)),
        compiler_params=pltpu.CompilerParams(
            dimension_semantics=("parallel",)),
    )(x_p, w1_p, b1_p, w2_p, b2_p, w3_p, b3_p)

    mu = mu_p if B_pad == B else mu_p[:B]
    # std is a constant row independent of x -> computed once in the wrapper.
    std = jnp.exp(params["logstd"])
    return mu, std


# --------------------------- parameter creation ---------------------------- #
def orthogonal(key, shape):
    """Deterministic orthogonal init (semi-orthogonal), PyTorch-style."""
    n_rows, n_cols = shape
    flat = jax.random.normal(key, (max(n_rows, n_cols), min(n_rows, n_cols)),
                             dtype=jnp.float32)
    q, r = jnp.linalg.qr(flat)
    d = jnp.sign(jnp.diag(r))
    d = jnp.where(d == 0, 1.0, d)       # avoid zeroing a column on zero diag
    q = q * d[None, :]
    if n_rows < n_cols:
        q = q.T
    return q[:n_rows, :n_cols]


def make_actor_params(key, state_dim, action_dim, hidden_dim):
    k1, k2, k3 = jax.random.split(key, 3)
    # PyTorch Linear weight is (out, in); we store its transpose (in, out)
    # so the kernel computes x @ w directly on the MXU.
    w1 = orthogonal(k1, (hidden_dim, state_dim)).T       # (S, H)
    w2 = orthogonal(k2, (hidden_dim, hidden_dim)).T      # (H, H)
    w3 = orthogonal(k3, (action_dim, hidden_dim)).T      # (H, A)
    return {
        "w1": w1, "b1": jnp.zeros((1, hidden_dim), jnp.float32),
        "w2": w2, "b2": jnp.zeros((1, hidden_dim), jnp.float32),
        "w3": w3, "b3": jnp.zeros((1, action_dim), jnp.float32),
        "logstd": jnp.zeros((1, action_dim), jnp.float32),
    }


# ------------------------------ references --------------------------------- #
def ref_forward_bf16(xv, p):
    """Pure-JAX reference with identical bf16-operand / f32-accumulate math."""
    xb = xv.astype(jnp.bfloat16)
    h1 = jnp.tanh(jnp.dot(xb, p["w1"].astype(jnp.bfloat16),
                          preferred_element_type=jnp.float32) + p["b1"]
                  ).astype(jnp.bfloat16)
    h2 = jnp.tanh(jnp.dot(h1, p["w2"].astype(jnp.bfloat16),
                          preferred_element_type=jnp.float32) + p["b2"]
                  ).astype(jnp.bfloat16)
    mu_r = jnp.dot(h2, p["w3"].astype(jnp.bfloat16),
                   preferred_element_type=jnp.float32) + p["b3"]
    return mu_r, jnp.exp(p["logstd"])


def ref_forward_f32(xv, p):
    """True f32 reference (matches the PyTorch module's numerics)."""
    h1 = jnp.tanh(xv @ p["w1"] + p["b1"])
    h2 = jnp.tanh(h1 @ p["w2"] + p["b2"])
    return h2 @ p["w3"] + p["b3"], jnp.exp(p["logstd"])


# --------------------------------- main ------------------------------------ #
if __name__ == "__main__":
    state_dim, action_dim, hidden_dim = 8, 4, 32

    key = jax.random.PRNGKey(0)
    kp, kx1, kx2 = jax.random.split(key, 3)
    params = make_actor_params(kp, state_dim, action_dim, hidden_dim)

    # Small case (grid = 1 tile).
    batch = 2
    x = jax.random.normal(kx1, (batch, state_dim), dtype=jnp.float32)
    mu, std = actor_forward(x, params)
    jax.block_until_ready((mu, std))

    mu_ref, std_ref = ref_forward_bf16(x, params)
    mu_f32, _ = ref_forward_f32(x, params)
    assert mu.shape == (batch, action_dim)
    assert std.shape == (1, action_dim)
    assert jnp.allclose(mu, mu_ref, atol=1e-3, rtol=1e-3), "mu mismatch (bf16 ref)"
    assert jnp.allclose(mu, mu_f32, atol=5e-2, rtol=5e-2), "mu mismatch (f32 ref)"
    assert jnp.allclose(std, std_ref), "std mismatch"

    # Larger case exercising the multi-tile (>=2 step) parallel grid + row pad.
    batch2 = 100
    x2 = jax.random.normal(kx2, (batch2, state_dim), dtype=jnp.float32)
    mu2, std2 = actor_forward(x2, params)
    jax.block_until_ready((mu2, std2))

    mu2_ref, _ = ref_forward_bf16(x2, params)
    mu2_f32, _ = ref_forward_f32(x2, params)
    assert mu2.shape == (batch2, action_dim)
    assert jnp.allclose(mu2, mu2_ref, atol=1e-3, rtol=1e-3), "mu mismatch (bf16 ref, B=100)"
    assert jnp.allclose(mu2, mu2_f32, atol=5e-2, rtol=5e-2), "mu mismatch (f32 ref, B=100)"

    print("KERNEL_OK")
</pallas_src>

<mosaic_0001>
module attributes {stable_mosaic.version = 11 : i64} {
  func.func @actor_kernel(%arg0: i32, %arg1: memref<16x8xf32, #tpu.memory_space<vmem>>, %arg2: memref<8x128xbf16, #tpu.memory_space<vmem>>, %arg3: memref<1x128xf32, #tpu.memory_space<vmem>>, %arg4: memref<128x128xbf16, #tpu.memory_space<vmem>>, %arg5: memref<1x128xf32, #tpu.memory_space<vmem>>, %arg6: memref<128x4xbf16, #tpu.memory_space<vmem>>, %arg7: memref<1x4xf32, #tpu.memory_space<vmem>>, %arg8: memref<16x4xf32, #tpu.memory_space<vmem>>) attributes {dimension_semantics = [#tpu.dimension_semantics<parallel>], iteration_bounds = array<i64: 1>, scalar_prefetch = 0 : i64, scratch_operands = 0 : i64, tpu.core_type = #tpu.core_type<tc>, window_params = [{transform_indices = @transform_0, window_bounds = array<i64: 16, 8>}, {pipeline_mode = #tpu.pipeline_mode<synchronous>, transform_indices = @transform_1, window_bounds = array<i64: 8, 128>}, {pipeline_mode = #tpu.pipeline_mode<synchronous>, transform_indices = @transform_2, window_bounds = array<i64: 1, 128>}, {pipeline_mode = #tpu.pipeline_mode<synchronous>, transform_indices = @transform_3, window_bounds = array<i64: 128, 128>}, {pipeline_mode = #tpu.pipeline_mode<synchronous>, transform_indices = @transform_4, window_bounds = array<i64: 1, 128>}, {pipeline_mode = #tpu.pipeline_mode<synchronous>, transform_indices = @transform_5, window_bounds = array<i64: 128, 4>}, {pipeline_mode = #tpu.pipeline_mode<synchronous>, transform_indices = @transform_6, window_bounds = array<i64: 1, 4>}, {transform_indices = @transform_7, window_bounds = array<i64: 16, 4>}]} {
    %c0 = arith.constant 0 : index
    %c0_0 = arith.constant 0 : index
    %0 = vector.load %arg1[%c0, %c0_0] : memref<16x8xf32, #tpu.memory_space<vmem>>, vector<16x8xf32>
    %1 = arith.truncf %0 : vector<16x8xf32> to vector<16x8xbf16>
    %c0_1 = arith.constant 0 : index
    %c0_2 = arith.constant 0 : index
    %2 = vector.load %arg2[%c0_1, %c0_2] : memref<8x128xbf16, #tpu.memory_space<vmem>>, vector<8x128xbf16>
    %cst = arith.constant dense<0.000000e+00> : vector<16x128xf32>
    %3 = tpu.matmul %1, %2, %cst {dimension_numbers = #tpu.dot_dimension_numbers<[1], [0], [0], [1], [0, 0, 1, 1], [], []>} : vector<16x8xbf16>, vector<8x128xbf16>, vector<16x128xf32> -> vector<16x128xf32>
    %c0_3 = arith.constant 0 : index
    %c0_4 = arith.constant 0 : index
    %4 = vector.load %arg3[%c0_3, %c0_4] : memref<1x128xf32, #tpu.memory_space<vmem>>, vector<1x128xf32>
    %5 = vector.broadcast %4 : vector<1x128xf32> to vector<16x128xf32>
    %6 = arith.addf %3, %5 : vector<16x128xf32>
    %7 = math.tanh %6 : vector<16x128xf32>
    %8 = arith.truncf %7 : vector<16x128xf32> to vector<16x128xbf16>
    %c0_5 = arith.constant 0 : index
    %c0_6 = arith.constant 0 : index
    %9 = vector.load %arg4[%c0_5, %c0_6] : memref<128x128xbf16, #tpu.memory_space<vmem>>, vector<128x128xbf16>
    %cst_7 = arith.constant dense<0.000000e+00> : vector<16x128xf32>
    %10 = tpu.matmul %8, %9, %cst_7 {dimension_numbers = #tpu.dot_dimension_numbers<[1], [0], [0], [1], [0, 0, 1, 1], [], []>} : vector<16x128xbf16>, vector<128x128xbf16>, vector<16x128xf32> -> vector<16x128xf32>
    %c0_8 = arith.constant 0 : index
    %c0_9 = arith.constant 0 : index
    %11 = vector.load %arg5[%c0_8, %c0_9] : memref<1x128xf32, #tpu.memory_space<vmem>>, vector<1x128xf32>
    %12 = vector.broadcast %11 : vector<1x128xf32> to vector<16x128xf32>
    %13 = arith.addf %10, %12 : vector<16x128xf32>
    %14 = math.tanh %13 : vector<16x128xf32>
    %15 = arith.truncf %14 : vector<16x128xf32> to vector<16x128xbf16>
    %c0_10 = arith.constant 0 : index
    %c0_11 = arith.constant 0 : index
    %16 = vector.load %arg6[%c0_10, %c0_11] : memref<128x4xbf16, #tpu.memory_space<vmem>>, vector<128x4xbf16>
    %cst_12 = arith.constant dense<0.000000e+00> : vector<16x4xf32>
    %17 = tpu.matmul %15, %16, %cst_12 {dimension_numbers = #tpu.dot_dimension_numbers<[1], [0], [0], [1], [0, 0, 1, 1], [], []>} : vector<16x128xbf16>, vector<128x4xbf16>, vector<16x4xf32> -> vector<16x4xf32>
    %c0_13 = arith.constant 0 : index
    %c0_14 = arith.constant 0 : index
    %18 = vector.load %arg7[%c0_13, %c0_14] : memref<1x4xf32, #tpu.memory_space<vmem>>, vector<1x4xf32>
    %19 = vector.broadcast %18 : vector<1x4xf32> to vector<16x4xf32>
    %20 = arith.addf %17, %19 : vector<16x4xf32>
    %c0_15 = arith.constant 0 : index
    %c0_16 = arith.constant 0 : index
    %21 = vector.load %arg8[%c0_15, %c0_16] : memref<16x4xf32, #tpu.memory_space<vmem>>, vector<16x4xf32>
    tpu.vector_store %arg8[%c0_15, %c0_16], %20 {strides = array<i32>} : memref<16x4xf32, #tpu.memory_space<vmem>>, vector<16x4xf32>,
    return
  }
  func.func @transform_0(%arg0: i32) -> (i32, i32) {
    %c0_i32 = arith.constant 0 : i32
    %c0_i32_0 = arith.constant 0 : i32
    return %arg0, %c0_i32 : i32, i32
  }
  func.func @transform_1(%arg0: i32) -> (i32, i32) {
    %c0_i32 = arith.constant 0 : i32
    %c0_i32_0 = arith.constant 0 : i32
    %c0_i32_1 = arith.constant 0 : i32
    return %c0_i32, %c0_i32_0 : i32, i32
  }
  func.func @transform_2(%arg0: i32) -> (i32, i32) {
    %c0_i32 = arith.constant 0 : i32
    %c0_i32_0 = arith.constant 0 : i32
    %c0_i32_1 = arith.constant 0 : i32
    return %c0_i32, %c0_i32_0 : i32, i32
  }
  func.func @transform_3(%arg0: i32) -> (i32, i32) {
    %c0_i32 = arith.constant 0 : i32
    %c0_i32_0 = arith.constant 0 : i32
    %c0_i32_1 = arith.constant 0 : i32
    return %c0_i32, %c0_i32_0 : i32, i32
  }
  func.func @transform_4(%arg0: i32) -> (i32, i32) {
    %c0_i32 = arith.constant 0 : i32
    %c0_i32_0 = arith.constant 0 : i32
    %c0_i32_1 = arith.constant 0 : i32
    return %c0_i32, %c0_i32_0 : i32, i32
  }
  func.func @transform_5(%arg0: i32) -> (i32, i32) {
    %c0_i32 = arith.constant 0 : i32
    %c0_i32_0 = arith.constant 0 : i32
    %c0_i32_1 = arith.constant 0 : i32
    return %c0_i32, %c0_i32_0 : i32, i32
  }
  func.func @transform_6(%arg0: i32) -> (i32, i32) {
    %c0_i32 = arith.constant 0 : i32
    %c0_i32_0 = arith.constant 0 : i32
    %c0_i32_1 = arith.constant 0 : i32
    return %c0_i32, %c0_i32_0 : i32, i32
  }
  func.func @transform_7(%arg0: i32) -> (i32, i32) {
    %c0_i32 = arith.constant 0 : i32
    %c0_i32_0 = arith.constant 0 : i32
    return %arg0, %c0_i32 : i32, i32
  }
}

</mosaic_0001>

<llo_original>
// kernel: tpu_custom_call.1
$region0: #{tpu_custom_call.1}
  #allocation0 [shape = 'u32[]', space=smem, size = 0x4, offset = 0x4, fixed_abs, tag = 'smem constant byte address 0x4 - core index']
  #allocation1 [shape = 'u32[144,128]{1,0:T(1,128)}', space=vmem, size = 0x12000, scoped, tag = 'internal scratch']
  %s0 = inlined_call_operand.vmem [shape: f32[16,8], index: 0, kind: input, shape index: {}]
  %s1 = inlined_call_operand.vmem [shape: bf16[8,128], index: 1, kind: input, shape index: {}]
  %s2 = inlined_call_operand.vmem [shape: f32[1,128], index: 2, kind: input, shape index: {}]
  %s3 = inlined_call_operand.vmem [shape: bf16[128,128], index: 3, kind: input, shape index: {}]
  %s4 = inlined_call_operand.vmem [shape: f32[1,128], index: 4, kind: input, shape index: {}]
  %s5 = inlined_call_operand.vmem [shape: bf16[128,4], index: 5, kind: input, shape index: {}]
  %s6 = inlined_call_operand.vmem [shape: f32[1,4], index: 6, kind: input, shape index: {}]
  %s7 = inlined_call_operand.vmem [shape: f32[16,4], index: 7, kind: output, shape index: {}]
  %s8 = sld [smem:[#allocation0]]
  $region38: #{tpu_custom_call.1} parent=0
    _
  %s10 = ssub.s32 1, %s8
  %s11 = scalar_select 0, %s10, %s8
  // Predicated region
  $region2: #{tpu_custom_call.1} parent=0 // pred_check
    _
  $region3: #{tpu_custom_call.1} parent=0 // pred_check_branch
    %13 = sbr.rel (0) target = $region5
  $region4: #{tpu_custom_call.1} parent=0 // pred_region
    _
  $region5: #{tpu_custom_call.1} parent=0 // pred_fallthru
    _
  // Predicated region
  $region6: #{tpu_custom_call.1} parent=0 // pred_check
    _
  $region7: #{tpu_custom_call.1} parent=0 // pred_check_branch
    %15 = sbr.rel (0) target = $region9
  $region8: #{tpu_custom_call.1} parent=0 // pred_region
    _
  $region9: #{tpu_custom_call.1} parent=0 // pred_fallthru
    _
  // Predicated region
  $region10: #{tpu_custom_call.1} parent=0 // pred_check
    _
  $region11: #{tpu_custom_call.1} parent=0 // pred_check_branch
    %17 = sbr.rel (0) target = $region13
  $region12: #{tpu_custom_call.1} parent=0 // pred_region
    _
  $region13: #{tpu_custom_call.1} parent=0 // pred_fallthru
    _
  // Predicated region
  $region14: #{tpu_custom_call.1} parent=0 // pred_check
    _
  $region15: #{tpu_custom_call.1} parent=0 // pred_check_branch
    %19 = sbr.rel (0) target = $region17
  $region16: #{tpu_custom_call.1} parent=0 // pred_region
    _
  $region17: #{tpu_custom_call.1} parent=0 // pred_fallthru
    _
  // Predicated region
  $region18: #{tpu_custom_call.1} parent=0 // pred_check
    _
  $region19: #{tpu_custom_call.1} parent=0 // pred_check_branch
    %21 = sbr.rel (0) target = $region21
  $region20: #{tpu_custom_call.1} parent=0 // pred_region
    _
  $region21: #{tpu_custom_call.1} parent=0 // pred_fallthru
    _
  // Predicated region
  $region22: #{tpu_custom_call.1} parent=0 // pred_check
    _
  $region23: #{tpu_custom_call.1} parent=0 // pred_check_branch
    %23 = sbr.rel (0) target = $region25
  $region24: #{tpu_custom_call.1} parent=0 // pred_region
    _
  $region25: #{tpu_custom_call.1} parent=0 // pred_fallthru
    _
  // Predicated region
  $region26: #{tpu_custom_call.1} parent=0 // pred_check
    _
  $region27: #{tpu_custom_call.1} parent=0 // pred_check_branch
    %25 = sbr.rel (0) target = $region29
  $region28: #{tpu_custom_call.1} parent=0 // pred_region
    _
  $region29: #{tpu_custom_call.1} parent=0 // pred_fallthru
    _
  %v27 = vld [vmem:[%s0] sm:$0xff]
  %v28 = vld [vmem:[%s0 + $0x8] sm:$0xff]
  %v29 = vpack.c.bf16 %v28, %v27
  %v30 = vld [vmem:[%s1] sm:$0xf]
  %v31 = vld [vmem:[%s2] sm:$0x1]
  %v33 = vlaneseq
  %v34 = vshrl.u32 %v33, 7
  %v35 = vsub.s32 0, %v34
  %v36 = vrot.slane %v31, %v35
  %vm38 = vcmask 64512
  %v40 = vsel %vm38, %v29, 0
  %vm42 = vcmask 1043456
  %v44 = vsel %vm42, %v30, 0
  %46 = vmatprep.subr.bf16.mxu0 0
  %47 = vmatpush1.bf16.msra.mxu0 %v44
  %48 = vmatprep.subr.bf16.mxu0 0
  %49 = vmatpush1.bf16.msra.mxu0 0
  %50 = vmatprep.subr.bf16.mxu0 0
  %51 = vmatpush1.bf16.msra.mxu0 0
  %52 = vmatprep.subr.bf16.mxu0 0
  %53 = vmatpush1.bf16.msra.mxu0 0
  %54 = vmatprep.subr.bf16.mxu0 0
  %55 = vmatpush1.bf16.msra.mxu0 0
  %56 = vmatprep.subr.bf16.mxu0 0
  %57 = vmatpush1.bf16.msra.mxu0 0
  %58 = vmatprep.subr.bf16.mxu0 0
  %59 = vmatpush1.bf16.msra.mxu0 0
  %60 = vmatprep.subr.bf16.mxu0 0
  %61 = vmatpush1.bf16.msra.mxu0 0
  %62 = vmatprep.subr.bf16.mxu0 0
  %63 = vmatpush1.bf16.msra.mxu0 0
  %64 = vmatprep.subr.bf16.mxu0 0
  %65 = vmatpush1.bf16.msra.mxu0 0
  %66 = vmatprep.subr.bf16.mxu0 0
  %67 = vmatpush1.bf16.msra.mxu0 0
  %68 = vmatprep.subr.bf16.mxu0 0
  %69 = vmatpush1.bf16.msra.mxu0 0
  %70 = vmatprep.subr.bf16.mxu0 0
  %71 = vmatpush1.bf16.msra.mxu0 0
  %72 = vmatprep.subr.bf16.mxu0 0
  %73 = vmatpush1.bf16.msra.mxu0 0
  %74 = vmatprep.subr.bf16.mxu0 0
  %75 = vmatpush1.bf16.msra.mxu0 0
  %76 = vmatprep.subr.bf16.mxu0 0
  %77 = vmatpush1.bf16.msra.mxu0 0
  %78 = vmatprep.mubr.bf16.mxu0 0
  %79 = vmatmul.mubr.bf16.gmra.mrb[0].mxu0 %v40
  %v80 = vpop.f32.mrb[0].mxu0
  %v81 = vadd.f32 %v36, %v80
  %v82 = vpop.f32.mrb[0].mxu0
  %v83 = vpop.f32.mrb[0].mxu0
  %v84 = vadd.f32 %v36, %v83
  %v85 = vpop.f32.mrb[0].mxu0
  %86 = vdwg.mxu0
  %v87 = vtanh.pop %v81
  %v88 = vtanh.pop %v84
  %v89 = vpack.c.bf16 %v88, %v87
  %v90 = vld [vmem:[%s3] sm:$0xf]
  %v91 = vld [vmem:[%s3 + $0x4] sm:$0xf]
  %v92 = vld [vmem:[%s3 + $0x8] sm:$0xf]
  %v93 = vld [vmem:[%s3 + $0xc] sm:$0xf]
  %v94 = vld [vmem:[%s3 + $0x10] sm:$0xf]
  %v95 = vld [vmem:[%s3 + $0x14] sm:$0xf]
  %v96 = vld [vmem:[%s3 + $0x18] sm:$0xf]
  %v97 = vld [vmem:[%s3 + $0x1c] sm:$0xf]
  %v98 = vld [vmem:[%s3 + $0x20] sm:$0xf]
  %v99 = vld [vmem:[%s3 + $0x24] sm:$0xf]
  %v100 = vld [vmem:[%s3 + $0x28] sm:$0xf]
  %v101 = vld [vmem:[%s3 + $0x2c] sm:$0xf]
  %v102 = vld [vmem:[%s3 + $0x30] sm:$0xf]
  %v103 = vld [vmem:[%s3 + $0x34] sm:$0xf]
  %v104 = vld [vmem:[%s3 + $0x38] sm:$0xf]
  %v105 = vld [vmem:[%s3 + $0x3c] sm:$0xf]
  %v106 = vld [vmem:[%s4] sm:$0x1]
  %v108 = vlaneseq
  %v109 = vshrl.u32 %v108, 7
  %v110 = vsub.s32 0, %v109
  %v111 = vrot.slane %v106, %v110
  %v129 = vunpack.c.l.b16 %v90
  %v130 = vunpack.c.l.b16 %v91
  %v131 = vunpack.c.l.b16 %v92
  %v132 = vunpack.c.l.b16 %v93
  %v133 = vunpack.c.l.b16 %v94
  %v134 = vunpack.c.l.b16 %v95
  %v135 = vunpack.c.l.b16 %v96
  %v136 = vunpack.c.l.b16 %v97
  %v137 = vunpack.c.l.b16 %v98
  %v138 = vunpack.c.l.b16 %v99
  %v139 = vunpack.c.l.b16 %v100
  %v140 = vunpack.c.l.b16 %v101
  %v141 = vunpack.c.l.b16 %v102
  %v142 = vunpack.c.l.b16 %v103
  %v143 = vunpack.c.l.b16 %v104
  %v144 = vunpack.c.l.b16 %v105
  %v145 = vpack.c.b16 %v130, %v129
  %v146 = vpack.c.b16 %v132, %v131
  %v147 = vpack.c.b16 %v134, %v133
  %v148 = vpack.c.b16 %v136, %v135
  %v149 = vpack.c.b16 %v138, %v137
  %v150 = vpack.c.b16 %v140, %v139
  %v151 = vpack.c.b16 %v142, %v141
  %v152 = vpack.c.b16 %v144, %v143
  %161 = vmatprep.subr.bf16.mxu0 0
  %162 = vmatpush1.bf16.msra.mxu0 %v145
  %163 = vmatprep.subr.bf16.mxu0 0
  %164 = vmatpush1.bf16.msra.mxu0 %v146
  %165 = vmatprep.subr.bf16.mxu0 0
  %166 = vmatpush1.bf16.msra.mxu0 %v147
  %167 = vmatprep.subr.bf16.mxu0 0
  %168 = vmatpush1.bf16.msra.mxu0 %v148
  %169 = vmatprep.subr.bf16.mxu0 0
  %170 = vmatpush1.bf16.msra.mxu0 %v149
  %171 = vmatprep.subr.bf16.mxu0 0
  %172 = vmatpush1.bf16.msra.mxu0 %v150
  %173 = vmatprep.subr.bf16.mxu0 0
  %174 = vmatpush1.bf16.msra.mxu0 %v151
  %175 = vmatprep.subr.bf16.mxu0 0
  %176 = vmatpush1.bf16.msra.mxu0 %v152
  %177 = vmatprep.subr.bf16.mxu0 0
  %178 = vmatpush1.bf16.msra.mxu0 0
  %179 = vmatprep.subr.bf16.mxu0 0
  %180 = vmatpush1.bf16.msra.mxu0 0
  %181 = vmatprep.subr.bf16.mxu0 0
  %182 = vmatpush1.bf16.msra.mxu0 0
  %183 = vmatprep.subr.bf16.mxu0 0
  %184 = vmatpush1.bf16.msra.mxu0 0
  %185 = vmatprep.subr.bf16.mxu0 0
  %186 = vmatpush1.bf16.msra.mxu0 0
  %187 = vmatprep.subr.bf16.mxu0 0
  %188 = vmatpush1.bf16.msra.mxu0 0
  %189 = vmatprep.subr.bf16.mxu0 0
  %190 = vmatpush1.bf16.msra.mxu0 0
  %191 = vmatprep.subr.bf16.mxu0 0
  %192 = vmatpush1.bf16.msra.mxu0 0
  %193 = vmatprep.mubr.bf16.mxu0 0
  %194 = vmatmul.mubr.bf16.gmra.mrb[0].mxu0 %v89
  %v195 = vpop.f32.mrb[0].mxu0
  %v196 = vadd.f32 %v111, %v195
  %v197 = vpop.f32.mrb[0].mxu0
  %v198 = vpop.f32.mrb[0].mxu0
  %v199 = vadd.f32 %v111, %v198
  %v200 = vpop.f32.mrb[0].mxu0
  %201 = vdwg.mxu0
  %v202 = vtanh.pop %v196
  %v203 = vtanh.pop %v199
  %v204 = vpack.c.bf16 %v203, %v202
  %v205 = vld [vmem:[%s5] sm:$0xf]
  %v206 = vld [vmem:[%s5 + $0x4] sm:$0xf]
  %v207 = vld [vmem:[%s5 + $0x8] sm:$0xf]
  %v208 = vld [vmem:[%s5 + $0xc] sm:$0xf]
  %v209 = vld [vmem:[%s5 + $0x10] sm:$0xf]
  %v210 = vld [vmem:[%s5 + $0x14] sm:$0xf]
  %v211 = vld [vmem:[%s5 + $0x18] sm:$0xf]
  %v212 = vld [vmem:[%s5 + $0x1c] sm:$0xf]
  %v213 = vld [vmem:[%s5 + $0x20] sm:$0xf]
  %v214 = vld [vmem:[%s5 + $0x24] sm:$0xf]
  %v215 = vld [vmem:[%s5 + $0x28] sm:$0xf]
  %v216 = vld [vmem:[%s5 + $0x2c] sm:$0xf]
  %v217 = vld [vmem:[%s5 + $0x30] sm:$0xf]
  %v218 = vld [vmem:[%s5 + $0x34] sm:$0xf]
  %v219 = vld [vmem:[%s5 + $0x38] sm:$0xf]
  %v220 = vld [vmem:[%s5 + $0x3c] sm:$0xf]
  %v221 = vld [vmem:[%s6] sm:$0x1]
  %v223 = vlaneseq
  %v224 = vshrl.u32 %v223, 7
  %v225 = vsub.s32 0, %v224
  %v226 = vrot.slane %v221, %v225
  %v244 = vunpack.c.l.b16 %v205
  %v245 = vunpack.c.l.b16 %v206
  %v246 = vunpack.c.l.b16 %v207
  %v247 = vunpack.c.l.b16 %v208
  %v248 = vunpack.c.l.b16 %v209
  %v249 = vunpack.c.l.b16 %v210
  %v250 = vunpack.c.l.b16 %v211
  %v251 = vunpack.c.l.b16 %v212
  %v252 = vunpack.c.l.b16 %v213
  %v253 = vunpack.c.l.b16 %v214
  %v254 = vunpack.c.l.b16 %v215
  %v255 = vunpack.c.l.b16 %v216
  %v256 = vunpack.c.l.b16 %v217
  %v257 = vunpack.c.l.b16 %v218
  %v258 = vunpack.c.l.b16 %v219
  %v259 = vunpack.c.l.b16 %v220
  %v260 = vpack.c.b16 %v245, %v244
  %v261 = vpack.c.b16 %v247, %v246
  %v262 = vpack.c.b16 %v249, %v248
  %v263 = vpack.c.b16 %v251, %v250
  %v264 = vpack.c.b16 %v253, %v252
  %v265 = vpack.c.b16 %v255, %v254
  %v266 = vpack.c.b16 %v257, %v256
  %v267 = vpack.c.b16 %v259, %v258
  %276 = vmatprep.subr.bf16.mxu0 0
  %277 = vmatpush1.bf16.msra.mxu0 %v260
  %278 = vmatprep.subr.bf16.mxu0 0
  %279 = vmatpush1.bf16.msra.mxu0 %v261
  %280 = vmatprep.subr.bf16.mxu0 0
  %281 = vmatpush1.bf16.msra.mxu0 %v262
  %282 = vmatprep.subr.bf16.mxu0 0
  %283 = vmatpush1.bf16.msra.mxu0 %v263
  %284 = vmatprep.subr.bf16.mxu0 0
  %285 = vmatpush1.bf16.msra.mxu0 %v264
  %286 = vmatprep.subr.bf16.mxu0 0
  %287 = vmatpush1.bf16.msra.mxu0 %v265
  %288 = vmatprep.subr.bf16.mxu0 0
  %289 = vmatpush1.bf16.msra.mxu0 %v266
  %290 = vmatprep.subr.bf16.mxu0 0
  %291 = vmatpush1.bf16.msra.mxu0 %v267
  %292 = vmatprep.subr.bf16.mxu0 0
  %293 = vmatpush1.bf16.msra.mxu0 0
  %294 = vmatprep.subr.bf16.mxu0 0
  %295 = vmatpush1.bf16.msra.mxu0 0
  %296 = vmatprep.subr.bf16.mxu0 0
  %297 = vmatpush1.bf16.msra.mxu0 0
  %298 = vmatprep.subr.bf16.mxu0 0
  %299 = vmatpush1.bf16.msra.mxu0 0
  %300 = vmatprep.subr.bf16.mxu0 0
  %301 = vmatpush1.bf16.msra.mxu0 0
  %302 = vmatprep.subr.bf16.mxu0 0
  %303 = vmatpush1.bf16.msra.mxu0 0
  %304 = vmatprep.subr.bf16.mxu0 0
  %305 = vmatpush1.bf16.msra.mxu0 0
  %306 = vmatprep.subr.bf16.mxu0 0
  %307 = vmatpush1.bf16.msra.mxu0 0
  %308 = vmatprep.mubr.bf16.mxu0 0
  %309 = vmatmul.mubr.bf16.gmra.mrb[0].mxu0 %v204
  %v310 = vpop.f32.mrb[0].mxu0
  %v311 = vadd.f32 %v226, %v310
  %v312 = vpop.f32.mrb[0].mxu0
  %v313 = vpop.f32.mrb[0].mxu0
  %v314 = vadd.f32 %v226, %v313
  %v315 = vpop.f32.mrb[0].mxu0
  %316 = vdwg.mxu0
  %vm317 = vcmask 31744
  %318 = vst.msk [vmem:[%s7] sm:$0xff] %vm317, %v311
  %319 = vst.msk [vmem:[%s7 + $0x8] sm:$0xff] %vm317, %v314
  // Predicated region
  $region30: #{tpu_custom_call.1} parent=0 // pred_check
    _
  $region31: #{tpu_custom_call.1} parent=0 // pred_check_branch
    %321 = sbr.rel (0) target = $region33
  $region32: #{tpu_custom_call.1} parent=0 // pred_region
    _
  $region33: #{tpu_custom_call.1} parent=0 // pred_fallthru
    _
  // Predicated region
  $region34: #{tpu_custom_call.1} parent=0 // pred_check
    _
  $region35: #{tpu_custom_call.1} parent=0 // pred_check_branch
    %323 = sbr.rel (0) target = $region37
  $region36: #{tpu_custom_call.1} parent=0 // pred_region
    _
  $region37: #{tpu_custom_call.1} parent=0 // pred_fallthru
    _

</llo_original>
